<compile_context>
chip_gen: v7x
topology: tpu7x:2x2x1
jax: 0.10.0
libtpu: 0.0.40
codegen_flags: <defaults>
</compile_context>

<pallas_src>
import jax
import jax.numpy as jnp
from jax.experimental import pallas as pl
from jax.experimental.pallas import tpu as pltpu

_EPS = 1e-12  # matches torch.nn.functional.normalize default eps


def _make_label2context_kernel(batch: int, seq_len: int):
    """Builds the single-step kernel for a fixed (batch, seq_len)."""
    B, S = batch, seq_len

    def kernel(x_ref, lab_ref, w_ref, o_ref):
        # x_ref:   (B*S, H)  flattened, batch-major encoder states
        # lab_ref: (L, E)    sliced label embeddings
        # w_ref:   (H, E)    projection weight in PyTorch (out, in) layout
        # o_ref:   (B, H)    output context vectors
        lab = lab_ref[...].astype(jnp.float32)                     # (L, E)
        w = w_ref[...].astype(jnp.float32)                         # (H, E)

        # ---- batch-invariant label path: computed ONCE per call ----
        # embedding_label.T = W @ lab.T -> (H, L); produced directly in the
        # orientation needed by the similarity matmul (no RHS transpose).
        emb_t = jax.lax.dot_general(
            w, lab,
            dimension_numbers=(((1,), (1,)), ((), ())),
            preferred_element_type=jnp.float32)                    # (H, L)
        # F.normalize(embedding_label.T, dim=0): per-label column over H.
        # 1/sqrt(max(ss, eps^2)) == 1/max(||v||, eps)  (torch semantics).
        inv_lab = jax.lax.rsqrt(
            jnp.maximum(jnp.sum(emb_t * emb_t, axis=0, keepdims=True),
                        _EPS * _EPS))
        emb_norm_t = (emb_t * inv_lab).astype(jnp.bfloat16)        # (H, L)

        # ---- input path: whole batch at once ----
        x = x_ref[...].astype(jnp.float32)                         # (B*S, H)
        # F.normalize(input_data, dim=-1)
        inv_x = jax.lax.rsqrt(
            jnp.maximum(jnp.sum(x * x, axis=-1, keepdims=True), _EPS * _EPS))
        x_norm = x * inv_x                                         # (B*S, H)

        # One bf16 MXU matmul for the whole batch, f32 accumulate.
        g = jnp.dot(x_norm.astype(jnp.bfloat16), emb_norm_t,
                    preferred_element_type=jnp.float32)            # (B*S, L)
        # max over labels (lane-axis reduce).
        max_g = jnp.max(g, axis=-1, keepdims=True)                 # (B*S, 1)

        # Per-batch softmax over the sequence + weighted sum.  B is tiny, so
        # this is a statically unrolled loop over sublane-aligned S-row slices.
        for b in range(B):
            lo, hi = b * S, (b + 1) * S
            mg_b = max_g[lo:hi, :]                                 # (S, 1)
            m = jnp.max(mg_b, axis=0, keepdims=True)               # (1, 1)
            e = jnp.exp(mg_b - m)                                  # (S, 1)
            den = jnp.sum(e, axis=0, keepdims=True)                # (1, 1)
            soft = e * pl.reciprocal(den, approx=True)             # (S, 1)
            xb = x_norm[lo:hi, :]                                  # (S, H)
            out_row = jnp.sum(xb * soft, axis=0, keepdims=True)    # (1, H)
            o_ref[b:b + 1, :] = out_row.astype(o_ref.dtype)

    return kernel


def label2context(input_data, label_repr, use_label_num, params):
    """Pallas implementation of Label2Context.forward."""
    start, end = int(use_label_num[0]), int(use_label_num[1])
    lb_num = end - start
    lab = label_repr[start:end]                                    # (L, E)

    if lb_num == 4:
        W = params["proj_label_top"]                               # (H, E)
    elif lb_num == 14:
        W = params["proj_label_sec"]
    elif lb_num == 193:
        W = params["proj_label_conn"]
    else:
        # TODO(synk): PyTorch leaves labels unprojected for other lb_num
        # (requires E == H); that path is never exercised by Model.forward.
        raise ValueError(f"unsupported lb_num={lb_num}")

    B, S, H = input_data.shape
    L, E = lab.shape
    x_flat = input_data.reshape(B * S, H)    # XLA-side metadata reshape

    # Advisory cost estimate (projection now counted once per call).
    flops = (2 * H * E * L                   # label projection (once)
             + 2 * B * S * H * L             # similarity matmul
             + 4 * B * S * H + 3 * H * L)    # normalize + weighted sum
    transcendentals = L + 2 * B * S + B      # rsqrt + exp + reciprocal
    bytes_accessed = 4 * (B * S * H + L * E + H * E + B * H)

    out = pl.pallas_call(
        _make_label2context_kernel(B, S),
        out_shape=jax.ShapeDtypeStruct((B, H), jnp.float32),
        in_specs=[
            pl.BlockSpec(memory_space=pltpu.MemorySpace.VMEM),
            pl.BlockSpec(memory_space=pltpu.MemorySpace.VMEM),
            pl.BlockSpec(memory_space=pltpu.MemorySpace.VMEM),
        ],
        out_specs=pl.BlockSpec(memory_space=pltpu.MemorySpace.VMEM),
        cost_estimate=pl.CostEstimate(
            flops=flops,
            transcendentals=transcendentals,
            bytes_accessed=bytes_accessed,
        ),
    )(x_flat, lab, W)
    return out


def label2context_ref(input_data, label_repr, use_label_num, params,
                      bf16_matmul=False):
    """Pure-JAX reference mirroring the PyTorch forward, for validation.

    bf16_matmul=True emulates the kernel's bf16 MXU similarity matmul so the
    kernel can be checked at tight tolerance against a matched-precision ref.
    """
    start, end = int(use_label_num[0]), int(use_label_num[1])
    lb_num = end - start
    lab = label_repr[start:end]
    if lb_num == 4:
        W = params["proj_label_top"]
    elif lb_num == 14:
        W = params["proj_label_sec"]
    elif lb_num == 193:
        W = params["proj_label_conn"]
    else:
        raise ValueError(f"unsupported lb_num={lb_num}")
    emb = (lab @ W.T).T                                            # (H, L)
    x = input_data / jnp.maximum(
        jnp.linalg.norm(input_data, axis=-1, keepdims=True), _EPS)
    emb = emb / jnp.maximum(jnp.linalg.norm(emb, axis=0, keepdims=True), _EPS)
    B, S, H = input_data.shape
    if bf16_matmul:
        G = jnp.dot(x.reshape(-1, H).astype(jnp.bfloat16),
                    emb.astype(jnp.bfloat16),
                    preferred_element_type=jnp.float32)
    else:
        G = x.reshape(-1, H) @ emb
    G = G.reshape(B, S, -1)
    max_G = jnp.max(G, axis=-1, keepdims=True)
    soft = jax.nn.softmax(max_G, axis=1)
    return jnp.sum(x * soft, axis=1)


if __name__ == "__main__":
    # Small shapes consistent with the module.
    B, S = 2, 8
    label_embedding_size = 32   # E
    attn_hidden_size = 32       # H
    n_labels = 4 + 14 + 193     # top / sec / conn label vocab = 211

    key = jax.random.PRNGKey(0)
    k1, k2, k3, k4, k5 = jax.random.split(key, 5)

    input_data = jax.random.normal(k1, (B, S, attn_hidden_size), jnp.float32)
    label_repr = jax.random.normal(
        k2, (n_labels, label_embedding_size), jnp.float32)

    scale = 1.0 / jnp.sqrt(jnp.float32(label_embedding_size))
    params = {
        "proj_label_top": scale * jax.random.normal(
            k3, (attn_hidden_size, label_embedding_size), jnp.float32),
        "proj_label_sec": scale * jax.random.normal(
            k4, (attn_hidden_size, label_embedding_size), jnp.float32),
        "proj_label_conn": scale * jax.random.normal(
            k5, (attn_hidden_size, label_embedding_size), jnp.float32),
    }

    # Exercise all three slices used by Model.forward: top / sec / conn.
    for use_label_num in ((0, 4), (4, 18), (18, 211)):
        out = jax.block_until_ready(
            label2context(input_data, label_repr, use_label_num, params))
        assert out.shape == (B, attn_hidden_size)

        # Tight check vs. a matched-precision reference (bf16 MXU similarity
        # emulated in JAX); residual differences are the approx reciprocal and
        # accumulation-order noise.
        ref_matched = label2context_ref(
            input_data, label_repr, use_label_num, params, bf16_matmul=True)
        assert jnp.allclose(out, ref_matched, atol=5e-4, rtol=5e-4), (
            f"mismatch vs matched-precision reference for slice {use_label_num}")

        # Loose check vs. the exact f32 PyTorch-semantics reference (the bf16
        # MXU path introduces ~1e-3 absolute differences).
        ref_f32 = label2context_ref(input_data, label_repr, use_label_num, params)
        assert jnp.allclose(out, ref_f32, atol=5e-3, rtol=5e-3), (
            f"mismatch vs f32 reference for slice {use_label_num}")

    print("KERNEL_OK")
</pallas_src>

<mosaic_0001>
module attributes {stable_mosaic.version = 11 : i64} {
  func.func @kernel(%arg0: memref<16x32xf32, #tpu.memory_space<vmem>>, %arg1: memref<4x32xf32, #tpu.memory_space<vmem>>, %arg2: memref<32x32xf32, #tpu.memory_space<vmem>>, %arg3: memref<2x32xf32, #tpu.memory_space<vmem>>) attributes {dimension_semantics = [], scalar_prefetch = 0 : i64, scratch_operands = 0 : i64, tpu.core_type = #tpu.core_type<tc>} {
    %c0 = arith.constant 0 : index
    %c0_0 = arith.constant 0 : index
    %0 = vector.load %arg1[%c0, %c0_0] : memref<4x32xf32, #tpu.memory_space<vmem>>, vector<4x32xf32>
    %c0_1 = arith.constant 0 : index
    %c0_2 = arith.constant 0 : index
    %1 = vector.load %arg2[%c0_1, %c0_2] : memref<32x32xf32, #tpu.memory_space<vmem>>, vector<32x32xf32>
    %cst = arith.constant dense<0.000000e+00> : vector<32x4xf32>
    %2 = tpu.matmul %1, %0, %cst {dimension_numbers = #tpu.dot_dimension_numbers<[1], [1], [0], [0], [0, 0, 1, 0], [], []>} : vector<32x32xf32>, vector<4x32xf32>, vector<32x4xf32> -> vector<32x4xf32>
    %3 = arith.mulf %2, %2 : vector<32x4xf32>
    %cst_3 = arith.constant dense<0.000000e+00> : vector<4xf32>
    %4 = vector.multi_reduction <add>, %3, %cst_3 [0] : vector<32x4xf32> to vector<4xf32>
    %5 = vector.shape_cast %4 : vector<4xf32> to vector<1x4xf32>
    %cst_4 = arith.constant 1.000000e-24 : f32
    %6 = vector.broadcast %cst_4 : f32 to vector<1x4xf32>
    %7 = arith.maximumf %5, %6 : vector<1x4xf32>
    %8 = math.rsqrt %7 : vector<1x4xf32>
    %9 = vector.broadcast %8 : vector<1x4xf32> to vector<32x4xf32>
    %10 = arith.mulf %2, %9 : vector<32x4xf32>
    %11 = arith.truncf %10 : vector<32x4xf32> to vector<32x4xbf16>
    %c0_5 = arith.constant 0 : index
    %c0_6 = arith.constant 0 : index
    %12 = vector.load %arg0[%c0_5, %c0_6] : memref<16x32xf32, #tpu.memory_space<vmem>>, vector<16x32xf32>
    %13 = arith.mulf %12, %12 : vector<16x32xf32>
    %cst_7 = arith.constant dense<0.000000e+00> : vector<16xf32>
    %14 = vector.multi_reduction <add>, %13, %cst_7 [1] : vector<16x32xf32> to vector<16xf32>
    %15 = vector.shape_cast %14 : vector<16xf32> to vector<16x1xf32>
    %cst_8 = arith.constant 1.000000e-24 : f32
    %16 = vector.broadcast %cst_8 : f32 to vector<16x1xf32>
    %17 = arith.maximumf %15, %16 : vector<16x1xf32>
    %18 = math.rsqrt %17 : vector<16x1xf32>
    %19 = vector.broadcast %18 : vector<16x1xf32> to vector<16x32xf32>
    %20 = arith.mulf %12, %19 : vector<16x32xf32>
    %21 = arith.truncf %20 : vector<16x32xf32> to vector<16x32xbf16>
    %cst_9 = arith.constant dense<0.000000e+00> : vector<16x4xf32>
    %22 = tpu.matmul %21, %11, %cst_9 {dimension_numbers = #tpu.dot_dimension_numbers<[1], [0], [0], [1], [0, 0, 1, 1], [], []>} : vector<16x32xbf16>, vector<32x4xbf16>, vector<16x4xf32> -> vector<16x4xf32>
    %cst_10 = arith.constant dense<0xFF800000> : vector<16xf32>
    %23 = vector.multi_reduction <maximumf>, %22, %cst_10 [1] : vector<16x4xf32> to vector<16xf32>
    %24 = vector.shape_cast %23 : vector<16xf32> to vector<16x1xf32>
    %25 = vector.extract_strided_slice %24 {offsets = [0, 0], sizes = [8, 1], strides = [1, 1]} : vector<16x1xf32> to vector<8x1xf32>
    %cst_11 = arith.constant dense<0xFF800000> : vector<1xf32>
    %26 = vector.multi_reduction <maximumf>, %25, %cst_11 [0] : vector<8x1xf32> to vector<1xf32>
    %27 = vector.shape_cast %26 : vector<1xf32> to vector<1x1xf32>
    %28 = vector.broadcast %27 : vector<1x1xf32> to vector<8x1xf32>
    %29 = arith.subf %25, %28 : vector<8x1xf32>
    %30 = math.exp %29 : vector<8x1xf32>
    %cst_12 = arith.constant dense<0.000000e+00> : vector<1xf32>
    %31 = vector.multi_reduction <add>, %30, %cst_12 [0] : vector<8x1xf32> to vector<1xf32>
    %32 = vector.shape_cast %31 : vector<1xf32> to vector<1x1xf32>
    %33 = tpu.reciprocal %32 {approx = true} : vector<1x1xf32> -> vector<1x1xf32>
    %34 = vector.broadcast %33 : vector<1x1xf32> to vector<8x1xf32>
    %35 = arith.mulf %30, %34 : vector<8x1xf32>
    %36 = vector.extract_strided_slice %20 {offsets = [0, 0], sizes = [8, 32], strides = [1, 1]} : vector<16x32xf32> to vector<8x32xf32>
    %37 = vector.broadcast %35 : vector<8x1xf32> to vector<8x32xf32>
    %38 = arith.mulf %36, %37 : vector<8x32xf32>
    %cst_13 = arith.constant dense<0.000000e+00> : vector<32xf32>
    %39 = vector.multi_reduction <add>, %38, %cst_13 [0] : vector<8x32xf32> to vector<32xf32>
    %40 = vector.shape_cast %39 : vector<32xf32> to vector<1x32xf32>
    %c0_14 = arith.constant 0 : index
    %c0_15 = arith.constant 0 : index
    %41 = vector.load %arg3[%c0_14, %c0_15] : memref<2x32xf32, #tpu.memory_space<vmem>>, vector<1x32xf32>
    tpu.vector_store %arg3[%c0_14, %c0_15], %40 {strides = array<i32>} : memref<2x32xf32, #tpu.memory_space<vmem>>, vector<1x32xf32>,
    %42 = vector.extract_strided_slice %24 {offsets = [8, 0], sizes = [8, 1], strides = [1, 1]} : vector<16x1xf32> to vector<8x1xf32>
    %cst_16 = arith.constant dense<0xFF800000> : vector<1xf32>
    %43 = vector.multi_reduction <maximumf>, %42, %cst_16 [0] : vector<8x1xf32> to vector<1xf32>
    %44 = vector.shape_cast %43 : vector<1xf32> to vector<1x1xf32>
    %45 = vector.broadcast %44 : vector<1x1xf32> to vector<8x1xf32>
    %46 = arith.subf %42, %45 : vector<8x1xf32>
    %47 = math.exp %46 : vector<8x1xf32>
    %cst_17 = arith.constant dense<0.000000e+00> : vector<1xf32>
    %48 = vector.multi_reduction <add>, %47, %cst_17 [0] : vector<8x1xf32> to vector<1xf32>
    %49 = vector.shape_cast %48 : vector<1xf32> to vector<1x1xf32>
    %50 = tpu.reciprocal %49 {approx = true} : vector<1x1xf32> -> vector<1x1xf32>
    %51 = vector.broadcast %50 : vector<1x1xf32> to vector<8x1xf32>
    %52 = arith.mulf %47, %51 : vector<8x1xf32>
    %53 = vector.extract_strided_slice %20 {offsets = [8, 0], sizes = [8, 32], strides = [1, 1]} : vector<16x32xf32> to vector<8x32xf32>
    %54 = vector.broadcast %52 : vector<8x1xf32> to vector<8x32xf32>
    %55 = arith.mulf %53, %54 : vector<8x32xf32>
    %cst_18 = arith.constant dense<0.000000e+00> : vector<32xf32>
    %56 = vector.multi_reduction <add>, %55, %cst_18 [0] : vector<8x32xf32> to vector<32xf32>
    %57 = vector.shape_cast %56 : vector<32xf32> to vector<1x32xf32>
    %c1 = arith.constant 1 : index
    %c0_19 = arith.constant 0 : index
    %58 = vector.load %arg3[%c1, %c0_19] : memref<2x32xf32, #tpu.memory_space<vmem>>, vector<1x32xf32>
    tpu.vector_store %arg3[%c1, %c0_19], %57 {strides = array<i32>} : memref<2x32xf32, #tpu.memory_space<vmem>>, vector<1x32xf32>,
    return
  }
}

</mosaic_0001>

<llo_original>
// kernel: tpu_custom_call.1
$region0: #{tpu_custom_call.1}
  #allocation0 [shape = 'u32[]', space=smem, size = 0x4, offset = 0x4, fixed_abs, tag = 'smem constant byte address 0x4 - core index']
  #allocation1 [shape = 'u32[144,128]{1,0:T(1,128)}', space=vmem, size = 0x12000, scoped, tag = 'internal scratch']
  %s0 = inlined_call_operand.hbm [shape: f32[16,32], index: 0, kind: input, shape index: {}]
  %s1 = inlined_call_operand.hbm [shape: f32[4,32], index: 1, kind: input, shape index: {}]
  %s2 = inlined_call_operand.hbm [shape: f32[32,32], index: 2, kind: input, shape index: {}]
  %s3 = inlined_call_operand.hbm [shape: f32[2,32], index: 3, kind: output, shape index: {}]
  %s4 = sld [smem:[#allocation0]]
  $region34: #{tpu_custom_call.1} parent=0
    _
  %s6 = ssub.s32 1, %s4
  %s7 = scalar_select 0, %s6, %s4
  $region1: #{tpu_custom_call.1} parent=0
    #allocation2 [shape = 'u8[8192]{0}', space=vmem, size = 0x2000, scoped, tag = 'input window, operand 0, single buffered']
    #allocation3 [shape = 's32[1]{0}', space=sflag, size = 0x4, scoped, tag = 'scoped memory for tpu_custom_call.1']
    #allocation4 [shape = 's32[1]{0}', space=sflag, size = 0x4, scoped, tag = 'scoped memory for tpu_custom_call.1']
    #allocation5 [shape = 'u8[2048]{0}', space=vmem, size = 0x800, scoped, tag = 'input window, operand 1, single buffered']
    #allocation6 [shape = 's32[1]{0}', space=sflag, size = 0x4, scoped, tag = 'scoped memory for tpu_custom_call.1']
    #allocation7 [shape = 'u8[16384]{0}', space=vmem, size = 0x4000, scoped, tag = 'input window, operand 2, single buffered']
    #allocation8 [shape = 'u8[1024]{0}', space=vmem, size = 0x400, scoped, tag = 'output window, operand 0, single buffered']
    %8 = vsyncpa [#allocation3], 0
    %9 = vsyncpa [#allocation6], 0
    %10 = vsyncpa [#allocation4], 0
    // Predicated region
    $region2: #{tpu_custom_call.1} parent=1 // pred_check
      _
    $region3: #{tpu_custom_call.1} parent=1 // pred_check_branch
      %12 = sbr.rel (0) target = $region5
    $region4: #{tpu_custom_call.1} parent=1 // pred_region
      %s14 = ssub.s32 256, 256
      %15 = vsyncadd [#allocation3], %s14
      %s16 = sshll.u32 [#allocation2], 4
      %s17 = int_to_ptr.vmem [resolvable:$true] %s16
      %22 = dma.hbm_to_vmem [thread:$0]  %s0, 256, %s17, [#allocation3], 128, 128, 8
    $region5: #{tpu_custom_call.1} parent=1 // pred_fallthru
      _
    // Predicated region
    $region6: #{tpu_custom_call.1} parent=1 // pred_check
      _
    $region7: #{tpu_custom_call.1} parent=1 // pred_check_branch
      %24 = sbr.rel (0) target = $region9
    $region8: #{tpu_custom_call.1} parent=1 // pred_region
      %s26 = ssub.s32 64, 64
      %27 = vsyncadd [#allocation6], %s26
      %s29 = sshll.u32 [#allocation5], 4
      %s30 = int_to_ptr.vmem [resolvable:$true] %s29
      %32 = dma.hbm_to_vmem [thread:$0]  %s1, 64, %s30, [#allocation6]
    $region9: #{tpu_custom_call.1} parent=1 // pred_fallthru
      _
    // Predicated region
    $region10: #{tpu_custom_call.1} parent=1 // pred_check
      _
    $region11: #{tpu_custom_call.1} parent=1 // pred_check_branch
      %34 = sbr.rel (0) target = $region13
    $region12: #{tpu_custom_call.1} parent=1 // pred_region
      %s36 = ssub.s32 512, 512
      %37 = vsyncadd [#allocation6], %s36
      %s38 = sshll.u32 [#allocation7], 4
      %s39 = int_to_ptr.vmem [resolvable:$true] %s38
      %44 = dma.hbm_to_vmem [thread:$0]  %s2, 512, %s39, [#allocation6], 128, 128, 8
    $region13: #{tpu_custom_call.1} parent=1 // pred_fallthru
      _
    // Predicated region
    $region14: #{tpu_custom_call.1} parent=1 // pred_check
      _
    $region15: #{tpu_custom_call.1} parent=1 // pred_check_branch
      %46 = sbr.rel (0) target = $region17
    $region16: #{tpu_custom_call.1} parent=1 // pred_region
      %47 = dma.done [#allocation3], 256
    $region17: #{tpu_custom_call.1} parent=1 // pred_fallthru
      _
    // Predicated region
    $region18: #{tpu_custom_call.1} parent=1 // pred_check
      _
    $region19: #{tpu_custom_call.1} parent=1 // pred_check_branch
      %49 = sbr.rel (0) target = $region21
    $region20: #{tpu_custom_call.1} parent=1 // pred_region
      %50 = dma.done [#allocation6], 64
    $region21: #{tpu_custom_call.1} parent=1 // pred_fallthru
      _
    // Predicated region
    $region22: #{tpu_custom_call.1} parent=1 // pred_check
      _
    $region23: #{tpu_custom_call.1} parent=1 // pred_check_branch
      %52 = sbr.rel (0) target = $region25
    $region24: #{tpu_custom_call.1} parent=1 // pred_region
      %53 = dma.done [#allocation6], 512
    $region25: #{tpu_custom_call.1} parent=1 // pred_fallthru
      _
    %v55 = vld [vmem:[#allocation5] sm:$0xf]
    %v56 = vld [vmem:[#allocation7] sm:$0xff]
    %v57 = vld [vmem:[#allocation7 + $0x8] sm:$0xff]
    %v58 = vld [vmem:[#allocation7 + $0x10] sm:$0xff]
    %v59 = vld [vmem:[#allocation7 + $0x18] sm:$0xff]
    %vm60 = vcmask 261120
    %v62 = vsel %vm60, %v56, 0
    %v65 = vsel %vm60, %v57, 0
    %v68 = vsel %vm60, %v58, 0
    %v71 = vsel %vm60, %v59, 0
    %v74 = vsel %vm60, %v55, 0
    %76 = vmatprep.subr.mxu0 0.0
    %77 = vmatpush1.xpose.msra.mxu0 %v74
    %78 = vmatprep.subr.mxu0 0.0
    %79 = vmatpush1.xpose.msra.mxu0 0.0
    %80 = vmatprep.subr.mxu0 0.0
    %81 = vmatpush1.xpose.msra.mxu0 0.0
    %82 = vmatprep.subr.mxu0 0.0
    %83 = vmatpush1.xpose.msra.mxu0 0.0
    %84 = vmatprep.subr.mxu0 0.0
    %85 = vmatpush1.xpose.msra.mxu0 0.0
    %86 = vmatprep.subr.mxu0 0.0
    %87 = vmatpush1.xpose.msra.mxu0 0.0
    %88 = vmatprep.subr.mxu0 0.0
    %89 = vmatpush1.xpose.msra.mxu0 0.0
    %90 = vmatprep.subr.mxu0 0.0
    %91 = vmatpush1.xpose.msra.mxu0 0.0
    %92 = vmatprep.subr.mxu0 0.0
    %93 = vmatpush1.xpose.msra.mxu0 0.0
    %94 = vmatprep.subr.mxu0 0.0
    %95 = vmatpush1.xpose.msra.mxu0 0.0
    %96 = vmatprep.subr.mxu0 0.0
    %97 = vmatpush1.xpose.msra.mxu0 0.0
    %98 = vmatprep.subr.mxu0 0.0
    %99 = vmatpush1.xpose.msra.mxu0 0.0
    %100 = vmatprep.subr.mxu0 0.0
    %101 = vmatpush1.xpose.msra.mxu0 0.0
    %102 = vmatprep.subr.mxu0 0.0
    %103 = vmatpush1.xpose.msra.mxu0 0.0
    %104 = vmatprep.subr.mxu0 0.0
    %105 = vmatpush1.xpose.msra.mxu0 0.0
    %106 = vmatprep.subr.mxu0 0.0
    %107 = vmatpush1.xpose.msra.mxu0 0.0
    %108 = vmatprep.subr.mxu0 0.0
    %109 = vmatpush1.xpose.msra.mxu0 0.0
    %110 = vmatprep.subr.mxu0 0.0
    %111 = vmatpush1.xpose.msra.mxu0 0.0
    %112 = vmatprep.subr.mxu0 0.0
    %113 = vmatpush1.xpose.msra.mxu0 0.0
    %114 = vmatprep.subr.mxu0 0.0
    %115 = vmatpush1.xpose.msra.mxu0 0.0
    %116 = vmatprep.subr.mxu0 0.0
    %117 = vmatpush1.xpose.msra.mxu0 0.0
    %118 = vmatprep.subr.mxu0 0.0
    %119 = vmatpush1.xpose.msra.mxu0 0.0
    %120 = vmatprep.subr.mxu0 0.0
    %121 = vmatpush1.xpose.msra.mxu0 0.0
    %122 = vmatprep.subr.mxu0 0.0
    %123 = vmatpush1.xpose.msra.mxu0 0.0
    %124 = vmatprep.subr.mxu0 0.0
    %125 = vmatpush1.xpose.msra.mxu0 0.0
    %126 = vmatprep.subr.mxu0 0.0
    %127 = vmatpush1.xpose.msra.mxu0 0.0
    %128 = vmatprep.subr.mxu0 0.0
    %129 = vmatpush1.xpose.msra.mxu0 0.0
    %130 = vmatprep.subr.mxu0 0.0
    %131 = vmatpush1.xpose.msra.mxu0 0.0
    %132 = vmatprep.subr.mxu0 0.0
    %133 = vmatpush1.xpose.msra.mxu0 0.0
    %134 = vmatprep.subr.mxu0 0.0
    %135 = vmatpush1.xpose.msra.mxu0 0.0
    %136 = vmatprep.subr.mxu0 0.0
    %137 = vmatpush1.xpose.msra.mxu0 0.0
    %138 = vmatprep.subr.mxu0 0.0
    %139 = vmatpush1.xpose.msra.mxu0 0.0
    %140 = vmatprep.mubr.f32.mxu0 0.0
    %141 = vmatmul.mubr.f32.gmra.mrb[0].mxu0 %v62
    %v142 = vpop.f32.mrb[0].mxu0
    %v143 = vadd.f32 0.0, %v142
    %v144 = vpop.f32.mrb[0].mxu0
    %145 = vmatprep.mubr.f32.mxu0 0.0
    %146 = vmatmul.mubr.f32.gmra.mrb[0].mxu0 %v65
    %v147 = vpop.f32.mrb[0].mxu0
    %v148 = vadd.f32 0.0, %v147
    %v149 = vpop.f32.mrb[0].mxu0
    %150 = vmatprep.mubr.f32.mxu0 0.0
    %151 = vmatmul.mubr.f32.gmra.mrb[0].mxu0 %v68
    %v152 = vpop.f32.mrb[0].mxu0
    %v153 = vadd.f32 0.0, %v152
    %v154 = vpop.f32.mrb[0].mxu0
    %155 = vmatprep.mubr.f32.mxu0 0.0
    %156 = vmatmul.mubr.f32.gmra.mrb[0].mxu0 %v71
    %v157 = vpop.f32.mrb[0].mxu0
    %v158 = vadd.f32 0.0, %v157
    %v159 = vpop.f32.mrb[0].mxu0
    %160 = vdwg.mxu0
    %v161 = vmul.f32 %v143, %v143
    %v162 = vmul.f32 %v148, %v148
    %v163 = vmul.f32 %v153, %v153
    %v164 = vmul.f32 %v158, %v158
    %vm165 = vcmask 31744
    %v166 = vsel %vm165, %v161, 0.0
    %v167 = vsel %vm165, %v162, 0.0
    %v168 = vadd.f32 %v166, %v167
    %v169 = vsel %vm165, %v163, 0.0
    %v170 = vadd.f32 %v168, %v169
    %v171 = vsel %vm165, %v164, 0.0
    %v172 = vadd.f32 %v170, %v171
    %v173 = vrot.slane %v172, 4
    %v174 = vadd.f32 %v172, %v173
    %v175 = vrot.slane %v174, 2
    %v176 = vadd.f32 %v174, %v175
    %v177 = vrot.slane %v176, 1
    %v178 = vadd.f32 %v176, %v177
    %v179 = vmax.f32 %v178, 1e-24
    %v180 = vrsqrt.pop %v179
    %v181 = vmul.f32 %v143, %v180
    %v182 = vmul.f32 %v148, %v180
    %v183 = vmul.f32 %v153, %v180
    %v184 = vmul.f32 %v158, %v180
    %v185 = vpack.c.bf16 %v182, %v181
    %v186 = vpack.c.bf16 %v184, %v183
    %v187 = vld [vmem:[#allocation2] sm:$0xff]
    %v188 = vld [vmem:[#allocation2 + $0x8] sm:$0xff]
    %v189 = vmul.f32 %v187, %v187
    %v190 = vmul.f32 %v188, %v188
    %v191 = vsel %vm60, %v189, 0.0
    %192 = vadd.xlane.f32.xlu0 %v191
    %v193 = vpop.xlane.xlu0 %192
    %v194 = vsel %vm60, %v190, 0.0
    %195 = vadd.xlane.f32.xlu0 %v194
    %v196 = vpop.xlane.xlu0 %195
    %v197 = vmax.f32 %v193, 1e-24
    %v198 = vmax.f32 %v196, 1e-24
    %v199 = vrsqrt.pop %v197
    %v200 = vrsqrt.pop %v198
    %v201 = vmul.f32 %v187, %v199
    %v202 = vmul.f32 %v188, %v200
    %v203 = vpack.c.bf16 %v202, %v201
    %v205 = vsel %vm60, %v203, 0
    %207 = vmatprep.subr.bf16.mxu0 0
    %208 = vmatpush1.bf16.msra.mxu0 %v185
    %209 = vmatprep.subr.bf16.mxu0 0
    %210 = vmatpush1.bf16.msra.mxu0 %v186
    %211 = vmatprep.subr.bf16.mxu0 0
    %212 = vmatpush1.bf16.msra.mxu0 0
    %213 = vmatprep.subr.bf16.mxu0 0
    %214 = vmatpush1.bf16.msra.mxu0 0
    %215 = vmatprep.subr.bf16.mxu0 0
    %216 = vmatpush1.bf16.msra.mxu0 0
    %217 = vmatprep.subr.bf16.mxu0 0
    %218 = vmatpush1.bf16.msra.mxu0 0
    %219 = vmatprep.subr.bf16.mxu0 0
    %220 = vmatpush1.bf16.msra.mxu0 0
    %221 = vmatprep.subr.bf16.mxu0 0
    %222 = vmatpush1.bf16.msra.mxu0 0
    %223 = vmatprep.subr.bf16.mxu0 0
    %224 = vmatpush1.bf16.msra.mxu0 0
    %225 = vmatprep.subr.bf16.mxu0 0
    %226 = vmatpush1.bf16.msra.mxu0 0
    %227 = vmatprep.subr.bf16.mxu0 0
    %228 = vmatpush1.bf16.msra.mxu0 0
    %229 = vmatprep.subr.bf16.mxu0 0
    %230 = vmatpush1.bf16.msra.mxu0 0
    %231 = vmatprep.subr.bf16.mxu0 0
    %232 = vmatpush1.bf16.msra.mxu0 0
    %233 = vmatprep.subr.bf16.mxu0 0
    %234 = vmatpush1.bf16.msra.mxu0 0
    %235 = vmatprep.subr.bf16.mxu0 0
    %236 = vmatpush1.bf16.msra.mxu0 0
    %237 = vmatprep.subr.bf16.mxu0 0
    %238 = vmatpush1.bf16.msra.mxu0 0
    %239 = vmatprep.mubr.bf16.mxu0 0
    %240 = vmatmul.mubr.bf16.gmra.mrb[0].mxu0 %v205
    %v241 = vpop.f32.mrb[0].mxu0
    %v242 = vadd.f32 0.0, %v241
    %v243 = vpop.f32.mrb[0].mxu0
    %v244 = vpop.f32.mrb[0].mxu0
    %v245 = vadd.f32 0.0, %v244
    %v246 = vpop.f32.mrb[0].mxu0
    %247 = vdwg.mxu0
    %v248 = vsel %vm165, %v242, -inf
    %249 = vmax.xlane.f32.xlu0 %v248
    %v250 = vpop.xlane.xlu0 %249
    %v251 = vsel %vm165, %v245, -inf
    %252 = vmax.xlane.f32.xlu0 %v251
    %v253 = vpop.xlane.xlu0 %252
    %v254 = vrot.slane %v250, 4
    %v255 = vmax.f32 %v250, %v254
    %v256 = vrot.slane %v255, 2
    %v257 = vmax.f32 %v255, %v256
    %v258 = vrot.slane %v257, 1
    %v259 = vmax.f32 %v257, %v258
    %v260 = vsub.f32 %v250, %v259
    %v261 = vmul.f32 %v260, 1.442695
    %v262 = vpow.pop %v261
    %v263 = vrot.slane %v262, 4
    %v264 = vadd.f32 %v262, %v263
    %v265 = vrot.slane %v264, 2
    %v266 = vadd.f32 %v264, %v265
    %v267 = vrot.slane %v266, 1
    %v268 = vadd.f32 %v266, %v267
    %v269 = vrcp.pop %v268
    %v270 = vmul.f32 %v262, %v269
    %v271 = vmul.f32 %v201, %v270
    %v272 = vsel %vm60, %v271, 0.0
    %v273 = vrot.slane %v272, 4
    %v274 = vadd.f32 %v272, %v273
    %v275 = vrot.slane %v274, 2
    %v276 = vadd.f32 %v274, %v275
    %v277 = vrot.slane %v276, 1
    %v278 = vadd.f32 %v276, %v277
    %vm279 = vcmask 253952
    %280 = vst.msk [vmem:[#allocation8] sm:$0x1] %vm279, %v278
    %v281 = vrot.slane %v253, 4
    %v282 = vmax.f32 %v253, %v281
    %v283 = vrot.slane %v282, 2
    %v284 = vmax.f32 %v282, %v283
    %v285 = vrot.slane %v284, 1
    %v286 = vmax.f32 %v284, %v285
    %v287 = vsub.f32 %v253, %v286
    %v288 = vmul.f32 %v287, 1.442695
    %v289 = vpow.pop %v288
    %v290 = vrot.slane %v289, 4
    %v291 = vadd.f32 %v289, %v290
    %v292 = vrot.slane %v291, 2
    %v293 = vadd.f32 %v291, %v292
    %v294 = vrot.slane %v293, 1
    %v295 = vadd.f32 %v293, %v294
    %v296 = vrcp.pop %v295
    %v297 = vmul.f32 %v289, %v296
    %v298 = vmul.f32 %v202, %v297
    %v299 = vsel %vm60, %v298, 0.0
    %v300 = vrot.slane %v299, 4
    %v301 = vadd.f32 %v299, %v300
    %v302 = vrot.slane %v301, 2
    %v303 = vadd.f32 %v301, %v302
    %v304 = vrot.slane %v303, 1
    %v305 = vadd.f32 %v303, %v304
    %306 = vst.msk [vmem:[#allocation8 + $0x1] sm:$0x1] %vm279, %v305
    // Predicated region
    $region26: #{tpu_custom_call.1} parent=1 // pred_check
      _
    $region27: #{tpu_custom_call.1} parent=1 // pred_check_branch
      %308 = sbr.rel (0) target = $region29
    $region28: #{tpu_custom_call.1} parent=1 // pred_region
      %s310 = ssub.s32 32, 32
      %311 = vsyncadd [#allocation4], %s310
      %s313 = sshll.u32 [#allocation8], 4
      %s314 = int_to_ptr.vmem [resolvable:$true] %s313
      %316 = dma.vmem_to_hbm [thread:$0]  %s314, 32, %s3, [#allocation4]
    $region29: #{tpu_custom_call.1} parent=1 // pred_fallthru
      _
    // Predicated region
    $region30: #{tpu_custom_call.1} parent=1 // pred_check
      _
    $region31: #{tpu_custom_call.1} parent=1 // pred_check_branch
      %318 = sbr.rel (0) target = $region33
    $region32: #{tpu_custom_call.1} parent=1 // pred_region
      %319 = dma.done [#allocation4], 32
    $region33: #{tpu_custom_call.1} parent=1 // pred_fallthru
      _
    %320 = vsyncpa [#allocation3], 1
    %321 = vsyncpa [#allocation6], 1
    %322 = vsyncpa [#allocation4], 1

</llo_original>
